<compile_context>
chip_gen: v7x
topology: tpu7x:2x2x1
jax: 0.10.0
libtpu: 0.0.40
codegen_flags: <defaults>
</compile_context>

<pallas_src>
import numpy as np
import jax
import jax.numpy as jnp
from jax.experimental import pallas as pl
from jax.experimental.pallas import tpu as pltpu


# Standard JPEG luminance quantization table; DiffJPEG stores it transposed.
_Y_TABLE = np.array(
    [[16, 11, 10, 16, 24, 40, 51, 61],
     [12, 12, 14, 19, 26, 58, 60, 55],
     [14, 13, 16, 24, 40, 57, 69, 56],
     [14, 17, 22, 29, 51, 87, 80, 62],
     [18, 22, 37, 56, 68, 109, 103, 77],
     [24, 35, 55, 64, 81, 104, 113, 92],
     [49, 64, 78, 87, 103, 121, 120, 101],
     [72, 92, 95, 98, 112, 100, 103, 99]],
    dtype=np.float32).T  # .T matches diffjpeg's y_table buffer

_LANES = 512        # lane-dense slab width: multiple of 128 (vreg) and of 64 (table period)
_TILE_ROWS = 1024   # (1024, 512) f32 = 2 MiB tile -> 8 MiB double-buffered in+out (v5e-safe)


def _y_quantize_kernel(inv_ref, img_ref, out_ref):
    # inv_ref: (1, LANES) = 1/(y_table*factor) tiled across lanes (broadcasts over rows)
    # img_ref/out_ref: (tile_r, LANES)
    # round-half-to-even matches torch.round.
    out_ref[...] = jnp.round(img_ref[...] * inv_ref[...])


def _round_up(x: int, m: int) -> int:
    return ((x + m - 1) // m) * m


def y_quantize(image: jax.Array, factor: float = 1.0) -> jax.Array:
    """image: (batch, num_blocks, 8, 8) -> quantized (batch, num_blocks, 8, 8) f32."""
    image = image.astype(jnp.float32)
    orig_shape = image.shape
    assert orig_shape[-2:] == (8, 8), "y_quantize operates on 8x8 DCT blocks"
    total = int(np.prod(orig_shape))

    # Exact f32 reciprocal of the factor-scaled table (64 values, computed once),
    # tiled to the 512-lane slab width.  Folding factor here drops the SMEM
    # scalar operand and the per-step scale from the kernel.
    inv64 = 1.0 / (jnp.asarray(_Y_TABLE, jnp.float32).reshape(1, 64) * factor)
    inv = jnp.tile(inv64, (1, _LANES // 64))                     # (1, 512)

    # Lane-dense (rows, 512) slab; rows sublane-aligned (multiple of 8) and
    # padded to a clean multiple of the tile so any input size tiles cleanly.
    rows = _round_up(pl.cdiv(total, _LANES), 8)
    tile_r = min(_TILE_ROWS, rows)                               # <= 2 MiB per tile
    rows_pad = _round_up(rows, tile_r)
    flat = jnp.pad(image.reshape(-1), (0, rows_pad * _LANES - total))
    flat = flat.reshape(rows_pad, _LANES)

    grid = (rows_pad // tile_r,)
    out = pl.pallas_call(
        _y_quantize_kernel,
        out_shape=jax.ShapeDtypeStruct((rows_pad, _LANES), jnp.float32),
        grid=grid,
        in_specs=[
            pl.BlockSpec((1, _LANES), lambda i: (0, 0)),         # reciprocal table
            pl.BlockSpec((tile_r, _LANES), lambda i: (i, 0)),    # image slab rows
        ],
        out_specs=pl.BlockSpec((tile_r, _LANES), lambda i: (i, 0)),
        compiler_params=pltpu.CompilerParams(
            dimension_semantics=("parallel",)),                  # megacore sharding on v7x
    )(inv, flat)

    return out.reshape(-1)[:total].reshape(orig_shape)


if __name__ == "__main__":
    key = jax.random.PRNGKey(0)
    # batch=2, 4 DCT blocks of 8x8 each (typical DiffJPEG intermediate shape)
    x = jax.random.normal(key, (2, 4, 8, 8), dtype=jnp.float32) * 200.0
    factor = 1.0

    y = y_quantize(x, factor)
    y = jax.block_until_ready(y)

    # Exact check against a pure-JAX reference of the same math (reciprocal-multiply).
    inv_tbl = (1.0 / (jnp.asarray(_Y_TABLE, jnp.float32) * factor))
    ref_mul = jnp.round(x * inv_tbl)
    np.testing.assert_array_equal(np.asarray(y), np.asarray(ref_mul))

    # Parity with the PyTorch spec (divide-then-round): reciprocal-multiply can
    # differ by at most one quantization step, and only when a value lands
    # within 1 ulp of a .5 rounding boundary (essentially never for real data).
    ref_spec = jnp.round(x / (jnp.asarray(_Y_TABLE, jnp.float32) * factor))
    max_diff = np.max(np.abs(np.asarray(y) - np.asarray(ref_spec)))
    assert max_diff <= 1.0, f"unexpected deviation from spec reference: {max_diff}"

    print("KERNEL_OK")
</pallas_src>

<mosaic_0001>
module attributes {stable_mosaic.version = 11 : i64} {
  func.func @_y_quantize_kernel(%arg0: i32, %arg1: memref<1x512xf32, #tpu.memory_space<vmem>>, %arg2: memref<8x512xf32, #tpu.memory_space<vmem>>, %arg3: memref<8x512xf32, #tpu.memory_space<vmem>>) attributes {dimension_semantics = [#tpu.dimension_semantics<parallel>], iteration_bounds = array<i64: 1>, scalar_prefetch = 0 : i64, scratch_operands = 0 : i64, tpu.core_type = #tpu.core_type<tc>, window_params = [{pipeline_mode = #tpu.pipeline_mode<synchronous>, transform_indices = @transform_0, window_bounds = array<i64: 1, 512>}, {transform_indices = @transform_1, window_bounds = array<i64: 8, 512>}, {transform_indices = @transform_2, window_bounds = array<i64: 8, 512>}]} {
    %c0 = arith.constant 0 : index
    %c0_0 = arith.constant 0 : index
    %0 = vector.load %arg2[%c0, %c0_0] : memref<8x512xf32, #tpu.memory_space<vmem>>, vector<8x512xf32>
    %c0_1 = arith.constant 0 : index
    %c0_2 = arith.constant 0 : index
    %1 = vector.load %arg1[%c0_1, %c0_2] : memref<1x512xf32, #tpu.memory_space<vmem>>, vector<1x512xf32>
    %2 = vector.broadcast %1 : vector<1x512xf32> to vector<8x512xf32>
    %3 = arith.mulf %0, %2 : vector<8x512xf32>
    %4 = math.roundeven %3 : vector<8x512xf32>
    %c0_3 = arith.constant 0 : index
    %c0_4 = arith.constant 0 : index
    %5 = vector.load %arg3[%c0_3, %c0_4] : memref<8x512xf32, #tpu.memory_space<vmem>>, vector<8x512xf32>
    tpu.vector_store %arg3[%c0_3, %c0_4], %4 {strides = array<i32>} : memref<8x512xf32, #tpu.memory_space<vmem>>, vector<8x512xf32>,
    return
  }
  func.func @transform_0(%arg0: i32) -> (i32, i32) {
    %c0_i32 = arith.constant 0 : i32
    %c0_i32_0 = arith.constant 0 : i32
    %c0_i32_1 = arith.constant 0 : i32
    return %c0_i32, %c0_i32_0 : i32, i32
  }
  func.func @transform_1(%arg0: i32) -> (i32, i32) {
    %c0_i32 = arith.constant 0 : i32
    %c0_i32_0 = arith.constant 0 : i32
    return %arg0, %c0_i32 : i32, i32
  }
  func.func @transform_2(%arg0: i32) -> (i32, i32) {
    %c0_i32 = arith.constant 0 : i32
    %c0_i32_0 = arith.constant 0 : i32
    return %arg0, %c0_i32 : i32, i32
  }
}

</mosaic_0001>

<llo_original>
// kernel: tpu_custom_call.1
$region0: #{tpu_custom_call.1}
  #allocation0 [shape = 'u32[]', space=smem, size = 0x4, offset = 0x4, fixed_abs, tag = 'smem constant byte address 0x4 - core index']
  #allocation1 [shape = 'u32[144,128]{1,0:T(1,128)}', space=vmem, size = 0x12000, scoped, tag = 'internal scratch']
  %s0 = inlined_call_operand.hbm [shape: f32[1,512], index: 0, kind: input, shape index: {}]
  %s1 = inlined_call_operand.hbm [shape: f32[8,512], index: 1, kind: input, shape index: {}]
  %s2 = inlined_call_operand.hbm [shape: f32[8,512], index: 2, kind: output, shape index: {}]
  %s3 = sld [smem:[#allocation0]]
  $region26: #{tpu_custom_call.1} parent=0
    _
  %s5 = ssub.s32 1, %s3
  %s6 = scalar_select 0, %s5, %s3
  $region1: #{tpu_custom_call.1} parent=0
    #allocation2 [shape = 'u8[2048]{0}', space=vmem, size = 0x800, scoped, tag = 'input window, operand 0, single buffered']
    #allocation3 [shape = 's32[1]{0}', space=sflag, size = 0x4, scoped, tag = 'scoped memory for tpu_custom_call.1']
    #allocation4 [shape = 's32[1]{0}', space=sflag, size = 0x4, scoped, tag = 'scoped memory for tpu_custom_call.1']
    #allocation5 [shape = 'u8[16384]{0}', space=vmem, size = 0x4000, scoped, tag = 'input window, operand 1, single buffered']
    #allocation6 [shape = 's32[1]{0}', space=sflag, size = 0x4, scoped, tag = 'scoped memory for tpu_custom_call.1']
    #allocation7 [shape = 'u8[16384]{0}', space=vmem, size = 0x4000, scoped, tag = 'output window, operand 0, single buffered']
    %7 = vsyncpa [#allocation3], 0
    %8 = vsyncpa [#allocation6], 0
    %9 = vsyncpa [#allocation4], 0
    // Predicated region
    $region2: #{tpu_custom_call.1} parent=1 // pred_check
      _
    $region3: #{tpu_custom_call.1} parent=1 // pred_check_branch
      %11 = sbr.rel (0) target = $region5
    $region4: #{tpu_custom_call.1} parent=1 // pred_region
      %s13 = ssub.s32 64, 64
      %14 = vsyncadd [#allocation3], %s13
      %s16 = sshll.u32 [#allocation2], 4
      %s17 = int_to_ptr.vmem [resolvable:$true] %s16
      %19 = dma.hbm_to_vmem [thread:$0]  %s0, 64, %s17, [#allocation3]
    $region5: #{tpu_custom_call.1} parent=1 // pred_fallthru
      _
    // Predicated region
    $region6: #{tpu_custom_call.1} parent=1 // pred_check
      _
    $region7: #{tpu_custom_call.1} parent=1 // pred_check_branch
      %21 = sbr.rel (0) target = $region9
    $region8: #{tpu_custom_call.1} parent=1 // pred_region
      %s23 = ssub.s32 512, 512
      %24 = vsyncadd [#allocation6], %s23
      %s26 = sshll.u32 [#allocation5], 4
      %s27 = int_to_ptr.vmem [resolvable:$true] %s26
      %29 = dma.hbm_to_vmem [thread:$0]  %s1, 512, %s27, [#allocation6]
    $region9: #{tpu_custom_call.1} parent=1 // pred_fallthru
      _
    // Predicated region
    $region10: #{tpu_custom_call.1} parent=1 // pred_check
      _
    $region11: #{tpu_custom_call.1} parent=1 // pred_check_branch
      %31 = sbr.rel (0) target = $region13
    $region12: #{tpu_custom_call.1} parent=1 // pred_region
      %32 = dma.done [#allocation3], 64
    $region13: #{tpu_custom_call.1} parent=1 // pred_fallthru
      _
    // Predicated region
    $region14: #{tpu_custom_call.1} parent=1 // pred_check
      _
    $region15: #{tpu_custom_call.1} parent=1 // pred_check_branch
      %34 = sbr.rel (0) target = $region17
    $region16: #{tpu_custom_call.1} parent=1 // pred_region
      %35 = dma.done [#allocation6], 512
    $region17: #{tpu_custom_call.1} parent=1 // pred_fallthru
      _
    %v36 = vld [vmem:[#allocation5] sm:$0xff]
    %v37 = vld [vmem:[#allocation5 + $0x8] sm:$0xff]
    %v38 = vld [vmem:[#allocation5 + $0x10] sm:$0xff]
    %v39 = vld [vmem:[#allocation5 + $0x18] sm:$0xff]
    %v40 = vld [vmem:[#allocation2] sm:$0xf]
    %v42 = vlaneseq
    %v43 = vshrl.u32 %v42, 7
    %v44 = vsub.s32 0, %v43
    %v45 = vrot.slane %v40, %v44
    %v46 = vlaneseq
    %v47 = vshrl.u32 %v46, 7
    %v48 = vsub.s32 1, %v47
    %v49 = vrot.slane %v40, %v48
    %v50 = vlaneseq
    %v51 = vshrl.u32 %v50, 7
    %v52 = vsub.s32 2, %v51
    %v53 = vrot.slane %v40, %v52
    %v54 = vlaneseq
    %v55 = vshrl.u32 %v54, 7
    %v56 = vsub.s32 3, %v55
    %v57 = vrot.slane %v40, %v56
    %v62 = vmul.f32 %v36, %v45
    %v63 = vmul.f32 %v37, %v49
    %v64 = vmul.f32 %v38, %v53
    %v65 = vmul.f32 %v39, %v57
    %v66 = vround.ne.pseudo %v62
    %v67 = vround.ne.pseudo %v63
    %v68 = vround.ne.pseudo %v64
    %v69 = vround.ne.pseudo %v65
    %70 = vst [vmem:[#allocation7] sm:$0xff] %v66
    %71 = vst [vmem:[#allocation7 + $0x8] sm:$0xff] %v67
    %72 = vst [vmem:[#allocation7 + $0x10] sm:$0xff] %v68
    %73 = vst [vmem:[#allocation7 + $0x18] sm:$0xff] %v69
    // Predicated region
    $region18: #{tpu_custom_call.1} parent=1 // pred_check
      _
    $region19: #{tpu_custom_call.1} parent=1 // pred_check_branch
      %75 = sbr.rel (0) target = $region21
    $region20: #{tpu_custom_call.1} parent=1 // pred_region
      %s77 = ssub.s32 512, 512
      %78 = vsyncadd [#allocation4], %s77
      %s80 = sshll.u32 [#allocation7], 4
      %s81 = int_to_ptr.vmem [resolvable:$true] %s80
      %83 = dma.vmem_to_hbm [thread:$0]  %s81, 512, %s2, [#allocation4]
    $region21: #{tpu_custom_call.1} parent=1 // pred_fallthru
      _
    // Predicated region
    $region22: #{tpu_custom_call.1} parent=1 // pred_check
      _
    $region23: #{tpu_custom_call.1} parent=1 // pred_check_branch
      %85 = sbr.rel (0) target = $region25
    $region24: #{tpu_custom_call.1} parent=1 // pred_region
      %86 = dma.done [#allocation4], 512
    $region25: #{tpu_custom_call.1} parent=1 // pred_fallthru
      _
    %87 = vsyncpa [#allocation3], 1
    %88 = vsyncpa [#allocation6], 1
    %89 = vsyncpa [#allocation4], 1

</llo_original>
